<compile_context>
chip_gen: v5e
topology: v5e:2x2
jax: 0.10.0
libtpu: 0.0.40
codegen_flags: <defaults>
</compile_context>

<pallas_src>
import jax
import jax.numpy as jnp
import numpy as np
from jax.experimental import pallas as pl
from jax.experimental.pallas import tpu as pltpu


# ------------------------------ helpers -------------------------------------

def _cdiv(a, b):
    return -(-a // b)


def _vmem_capacity_bytes():
    """Generation-aware VMEM capacity (v5e/v6e: 128 MiB, v7x: 64 MiB)."""
    try:
        cap = int(pltpu.get_tpu_info().vmem_capacity_bytes)
        if cap > 0:
            return cap
    except Exception:
        pass
    return 64 << 20  # conservative fallback = v7x per-TC physical VMEM


def _lane_tile(dim, per_lane_bytes, budget_bytes, cap=65536):
    """Largest 128-multiple lane tile whose (double-buffered) blocks fit budget."""
    if dim <= 128:
        return dim                       # full-extent block: always legal
    t = budget_bytes // max(per_lane_bytes, 1)
    t = min(t, cap, dim)
    return max(128, (t // 128) * 128)


def _row_tile(dim, per_row_bytes, budget_bytes, cap=2048):
    """Largest 8-multiple sublane tile whose (double-buffered) blocks fit budget."""
    if dim <= 8:
        return dim
    t = budget_bytes // max(per_row_bytes, 1)
    t = min(t, cap, dim)
    return max(8, (t // 8) * 8)


def _ensure_multi_step(dim, tile, quantum, other_steps=1, min_steps=2, min_tile=1024):
    """Shrink `tile` so the grid has >= min_steps iterations (keeps both v7x
    TensorCores busy), but only while the resulting tiles stay large."""
    floor = max(quantum, min_tile)
    while other_steps * _cdiv(dim, tile) < min_steps and tile >= 2 * floor:
        tile = max(quantum, ((tile // 2) // quantum) * quantum)
    return tile


def _vmem_limit(step_block_bytes, resident_bytes, capacity):
    """Double-buffered pipelined blocks + resident weights + Mosaic scratch
    headroom, never more than 75% of physical VMEM."""
    needed = 2 * step_block_bytes + resident_bytes + (8 << 20)
    return int(max(32 << 20, min(int(0.75 * capacity), needed)))


# ------------------------------ kernels -------------------------------------

def _conv1x1_cf_kernel(x_ref, w_ref, b_ref, o_ref):
    """Channels-first 1x1 conv tile on the MXU.
    x: (C_in, TL)  w: (C_out, C_in)  b: (C_out, 1)  o: (C_out, TL)."""
    acc = jnp.dot(w_ref[...], x_ref[...], preferred_element_type=jnp.float32)
    o_ref[...] = (acc + b_ref[...].astype(jnp.float32)).astype(o_ref.dtype)


def _dense_bias_kernel(x_ref, w_ref, b_ref, o_ref):
    """Row tile of x @ w + b.  x: (TM, K)  w: (K, N)  b: (1, N)  o: (TM, N)."""
    acc = jnp.dot(x_ref[...], w_ref[...], preferred_element_type=jnp.float32)
    o_ref[...] = (acc + b_ref[...].astype(jnp.float32)).astype(o_ref.dtype)


# ------------------------------ wrappers ------------------------------------

def conv1x1_nchw(x_nchw, w_oc, b_o1, out_dtype=None):
    """1x1 Conv2d with PyTorch NCHW semantics, no layout transposes.
    x: (N, C_in, H, W), w: (C_out, C_in), b: (C_out, 1).
    Note: on v5e, passing out_dtype=jnp.bfloat16 halves the dominant output
    traffic if downstream tolerates it."""
    n, c_in, h, wsp = x_nchw.shape
    c_out = w_oc.shape[0]
    hw = h * wsp
    out_dtype = np.dtype(out_dtype or x_nchw.dtype)
    x_cf = x_nchw.reshape(n, c_in, hw)          # contiguous -> free reshape

    x_item = x_cf.dtype.itemsize
    o_item = out_dtype.itemsize
    w_bytes = int(w_oc.size) * w_oc.dtype.itemsize + int(b_o1.size) * b_o1.dtype.itemsize

    cap = _vmem_capacity_bytes()
    block_budget = max(int(0.55 * cap) - w_bytes, 1 << 20)
    per_lane = 2 * (c_in * x_item + c_out * o_item)      # dbl-buffered in + out
    tl = _lane_tile(hw, per_lane, block_budget)          # spatial (lane) tile
    tl = _ensure_multi_step(hw, tl, 128, other_steps=n)  # keep >=2 grid steps

    grid = (n, _cdiv(hw, tl))                            # ragged last block is masked
    step_bytes = tl * (c_in * x_item + c_out * o_item)

    y = pl.pallas_call(
        _conv1x1_cf_kernel,
        out_shape=jax.ShapeDtypeStruct((n, c_out, hw), out_dtype),
        grid=grid,
        in_specs=[
            pl.BlockSpec((None, c_in, tl), lambda i, t: (i, 0, t)),
            pl.BlockSpec((c_out, c_in), lambda i, t: (0, 0)),   # resident weight
            pl.BlockSpec((c_out, 1), lambda i, t: (0, 0)),      # resident bias
        ],
        out_specs=pl.BlockSpec((None, c_out, tl), lambda i, t: (i, 0, t)),
        compiler_params=pltpu.CompilerParams(
            dimension_semantics=("parallel", "parallel"),
            vmem_limit_bytes=_vmem_limit(step_bytes, w_bytes, cap),
        ),
        cost_estimate=pl.CostEstimate(
            flops=int(2 * n * hw * c_in * c_out),
            transcendentals=0,
            bytes_accessed=int(x_cf.size) * x_item + n * c_out * hw * o_item + w_bytes,
        ),
    )(x_cf, w_oc, b_o1)
    return y.reshape(n, c_out, h, wsp)


def linear(x_bsd, w_kn, b_1n, out_dtype=None):
    """nn.Linear with PyTorch semantics.  x: (B, S, D_in), w_kn: (D_in, D_out)
    pre-transposed, b_1n: (1, D_out).  Output written unpadded (masked stores)
    -- no extra XLA slice pass."""
    bb, ss, d_in = x_bsd.shape
    d_out = w_kn.shape[1]
    out_dtype = np.dtype(out_dtype or x_bsd.dtype)
    m = bb * ss
    x2d = x_bsd.reshape(m, d_in)

    x_item = x2d.dtype.itemsize
    o_item = out_dtype.itemsize
    w_bytes = int(w_kn.size) * w_kn.dtype.itemsize + int(b_1n.size) * b_1n.dtype.itemsize

    cap = _vmem_capacity_bytes()
    block_budget = max(int(0.55 * cap) - w_bytes, 1 << 20)
    per_row = 2 * (d_in * x_item + d_out * o_item)       # dbl-buffered in + out
    tm = _row_tile(m, per_row, block_budget)             # token (sublane) tile
    tm = _ensure_multi_step(m, tm, 8, min_tile=256)

    grid = (_cdiv(m, tm),)                               # ragged last block is masked
    step_bytes = tm * (d_in * x_item + d_out * o_item)

    y = pl.pallas_call(
        _dense_bias_kernel,
        out_shape=jax.ShapeDtypeStruct((m, d_out), out_dtype),
        grid=grid,
        in_specs=[
            pl.BlockSpec((tm, d_in), lambda i: (i, 0)),
            pl.BlockSpec((d_in, d_out), lambda i: (0, 0)),      # resident weight
            pl.BlockSpec((1, d_out), lambda i: (0, 0)),         # resident bias
        ],
        out_specs=pl.BlockSpec((tm, d_out), lambda i: (i, 0)),
        compiler_params=pltpu.CompilerParams(
            dimension_semantics=("parallel",),
            vmem_limit_bytes=_vmem_limit(step_bytes, w_bytes, cap),
        ),
        cost_estimate=pl.CostEstimate(
            flops=int(2 * m * d_in * d_out),
            transcendentals=0,
            bytes_accessed=int(x2d.size) * x_item + m * d_out * o_item + w_bytes,
        ),
    )(x2d, w_kn, b_1n)
    return y.reshape(bb, ss, d_out)


# ------------------------------ module --------------------------------------

class HybridConditionerPallas:
    """Forward-pass equivalent of HybridConditioner with the canonical
    sub-conditioners:
        concat_conditioner    = Conv2d(c_in, c_out, kernel_size=1)
        crossattn_conditioner = Linear(d_in, d_out)
    `param_dtype` should match the expected activation dtype (f32 here) so the
    resident weight tiles are not re-cast on the VPU every grid step.
    # TODO(synk): arbitrary instantiate_from_config sub-modules cannot be
    # translated generically; only the canonical conv1x1 + linear pair is done.
    """

    def __init__(self, c_in, c_out, d_in, d_out, key, param_dtype=jnp.float32):
        k0, k1, k2, k3 = jax.random.split(key, 4)
        # Deterministic synthetic parameters (PyTorch-like fan-in scaling), f32 masters.
        self.conv_w_f32 = jax.random.normal(k0, (c_out, c_in), jnp.float32) / jnp.sqrt(c_in)
        self.conv_b_f32 = jax.random.normal(k1, (c_out,), jnp.float32) * 0.01
        self.lin_w_f32 = jax.random.normal(k2, (d_out, d_in), jnp.float32) / jnp.sqrt(d_in)
        self.lin_b_f32 = jax.random.normal(k3, (d_out,), jnp.float32) * 0.01
        self.param_dtype = param_dtype
        self.d_out = d_out

        # Kernel-ready parameters: weights in the activation dtype, f32 biases
        # for the epilogue add.
        self.conv_w = self.conv_w_f32.astype(param_dtype)        # (C_out, C_in)
        self.conv_b = self.conv_b_f32.reshape(c_out, 1)          # (C_out, 1) f32
        self.lin_w = self.lin_w_f32.T.astype(param_dtype)        # (D_in, D_out)
        self.lin_b = self.lin_b_f32.reshape(1, d_out)            # (1, D_out) f32

    def __call__(self, c_concat, c_crossattn):
        # TODO(synk): the two tiny branches could be fused into one pallas_call
        # for the launch-bound small-shape regime; kept separate here so XLA
        # may still overlap them under jit.
        c_concat_out = conv1x1_nchw(c_concat, self.conv_w, self.conv_b,
                                    out_dtype=c_concat.dtype)
        c_crossattn_out = linear(c_crossattn, self.lin_w, self.lin_b,
                                 out_dtype=c_crossattn.dtype)
        return {"c_concat": [c_concat_out], "c_crossattn": [c_crossattn_out]}


if __name__ == "__main__":
    key = jax.random.PRNGKey(0)
    k_in0, k_in1, k_params = jax.random.split(key, 3)

    # Small shapes consistent with the forward pass.
    B, C_IN, H, W = 2, 4, 16, 16        # concat branch (NCHW)
    S, D_IN = 8, 32                     # crossattn branch (B, S, D)
    C_OUT, D_OUT = 8, 64

    c_concat = jax.random.normal(k_in0, (B, C_IN, H, W), jnp.float32)
    c_crossattn = jax.random.normal(k_in1, (B, S, D_IN), jnp.float32)

    model = HybridConditionerPallas(C_IN, C_OUT, D_IN, D_OUT, k_params)
    fwd = jax.jit(lambda a, b: model(a, b))     # lets XLA overlap the two branches
    out = fwd(c_concat, c_crossattn)

    jax.block_until_ready(out["c_concat"][0])
    jax.block_until_ready(out["c_crossattn"][0])

    # Sanity check against a plain-JAX reference built from the same weights
    # the kernels consume, accumulated in f32.
    wq_conv = model.conv_w.astype(jnp.float32)                  # (C_out, C_in)
    wq_lin = model.lin_w.astype(jnp.float32).T                  # (D_out, D_in)
    hi = jax.lax.Precision.HIGHEST
    ref_concat = (jnp.einsum("nchw,oc->nohw", c_concat, wq_conv, precision=hi)
                  + model.conv_b_f32[None, :, None, None])
    ref_cross = (jnp.einsum("bsd,od->bso", c_crossattn, wq_lin, precision=hi)
                 + model.lin_b_f32)

    assert out["c_concat"][0].shape == (B, C_OUT, H, W)
    assert out["c_crossattn"][0].shape == (B, S, D_OUT)
    assert jnp.allclose(out["c_concat"][0], ref_concat, atol=2e-2, rtol=2e-2)
    assert jnp.allclose(out["c_crossattn"][0], ref_cross, atol=2e-2, rtol=2e-2)

    print("KERNEL_OK")
</pallas_src>

<mosaic_0001>
module attributes {stable_mosaic.version = 11 : i64} {
  func.func @_conv1x1_cf_kernel(%arg0: i32, %arg1: i32, %arg2: memref<1x4x256xf32, #tpu.memory_space<vmem>>, %arg3: memref<8x4xf32, #tpu.memory_space<vmem>>, %arg4: memref<8x1xf32, #tpu.memory_space<vmem>>, %arg5: memref<1x8x256xf32, #tpu.memory_space<vmem>>) attributes {dimension_semantics = [#tpu.dimension_semantics<parallel>, #tpu.dimension_semantics<parallel>], iteration_bounds = array<i64: 2, 1>, scalar_prefetch = 0 : i64, scratch_operands = 0 : i64, tpu.core_type = #tpu.core_type<tc>, window_params = [{transform_indices = @transform_0, window_bounds = array<i64: 1, 4, 256>}, {pipeline_mode = #tpu.pipeline_mode<synchronous>, transform_indices = @transform_1, window_bounds = array<i64: 8, 4>}, {pipeline_mode = #tpu.pipeline_mode<synchronous>, transform_indices = @transform_2, window_bounds = array<i64: 8, 1>}, {transform_indices = @transform_3, window_bounds = array<i64: 1, 8, 256>}]} {
    %c0 = arith.constant 0 : index
    %c0_0 = arith.constant 0 : index
    %0 = vector.load %arg3[%c0, %c0_0] : memref<8x4xf32, #tpu.memory_space<vmem>>, vector<8x4xf32>
    %c0_1 = arith.constant 0 : index
    %c0_2 = arith.constant 0 : index
    %c0_3 = arith.constant 0 : index
    %1 = vector.load %arg2[%c0_1, %c0_2, %c0_3] : memref<1x4x256xf32, #tpu.memory_space<vmem>>, vector<1x4x256xf32>
    %2 = vector.shape_cast %1 : vector<1x4x256xf32> to vector<4x256xf32>
    %cst = arith.constant dense<0.000000e+00> : vector<8x256xf32>
    %3 = tpu.matmul %0, %2, %cst {dimension_numbers = #tpu.dot_dimension_numbers<[1], [0], [0], [1], [0, 0, 1, 1], [], []>} : vector<8x4xf32>, vector<4x256xf32>, vector<8x256xf32> -> vector<8x256xf32>
    %c0_4 = arith.constant 0 : index
    %c0_5 = arith.constant 0 : index
    %4 = vector.load %arg4[%c0_4, %c0_5] : memref<8x1xf32, #tpu.memory_space<vmem>>, vector<8x1xf32>
    %5 = vector.broadcast %4 : vector<8x1xf32> to vector<8x256xf32>
    %6 = arith.addf %3, %5 : vector<8x256xf32>
    %c0_6 = arith.constant 0 : index
    %c0_7 = arith.constant 0 : index
    %c0_8 = arith.constant 0 : index
    %7 = vector.load %arg5[%c0_6, %c0_7, %c0_8] : memref<1x8x256xf32, #tpu.memory_space<vmem>>, vector<1x8x256xf32>
    %8 = vector.shape_cast %7 : vector<1x8x256xf32> to vector<8x256xf32>
    %9 = vector.shape_cast %6 : vector<8x256xf32> to vector<1x8x256xf32>
    tpu.vector_store %arg5[%c0_6, %c0_7, %c0_8], %9 {strides = array<i32>} : memref<1x8x256xf32, #tpu.memory_space<vmem>>, vector<1x8x256xf32>,
    return
  }
  func.func @transform_0(%arg0: i32, %arg1: i32) -> (i32, i32, i32) {
    %c0_i32 = arith.constant 0 : i32
    %c0_i32_0 = arith.constant 0 : i32
    return %arg0, %c0_i32, %arg1 : i32, i32, i32
  }
  func.func @transform_1(%arg0: i32, %arg1: i32) -> (i32, i32) {
    %c0_i32 = arith.constant 0 : i32
    %c0_i32_0 = arith.constant 0 : i32
    %c0_i32_1 = arith.constant 0 : i32
    return %c0_i32, %c0_i32_0 : i32, i32
  }
  func.func @transform_2(%arg0: i32, %arg1: i32) -> (i32, i32) {
    %c0_i32 = arith.constant 0 : i32
    %c0_i32_0 = arith.constant 0 : i32
    %c0_i32_1 = arith.constant 0 : i32
    return %c0_i32, %c0_i32_0 : i32, i32
  }
  func.func @transform_3(%arg0: i32, %arg1: i32) -> (i32, i32, i32) {
    %c0_i32 = arith.constant 0 : i32
    %c0_i32_0 = arith.constant 0 : i32
    return %arg0, %c0_i32, %arg1 : i32, i32, i32
  }
}

module attributes {stable_mosaic.version = 11 : i64} {
  func.func @_dense_bias_kernel(%arg0: i32, %arg1: memref<16x32xf32, #tpu.memory_space<vmem>>, %arg2: memref<32x64xf32, #tpu.memory_space<vmem>>, %arg3: memref<1x64xf32, #tpu.memory_space<vmem>>, %arg4: memref<16x64xf32, #tpu.memory_space<vmem>>) attributes {dimension_semantics = [#tpu.dimension_semantics<parallel>], iteration_bounds = array<i64: 1>, scalar_prefetch = 0 : i64, scratch_operands = 0 : i64, tpu.core_type = #tpu.core_type<tc>, window_params = [{transform_indices = @transform_0, window_bounds = array<i64: 16, 32>}, {pipeline_mode = #tpu.pipeline_mode<synchronous>, transform_indices = @transform_1, window_bounds = array<i64: 32, 64>}, {pipeline_mode = #tpu.pipeline_mode<synchronous>, transform_indices = @transform_2, window_bounds = array<i64: 1, 64>}, {transform_indices = @transform_3, window_bounds = array<i64: 16, 64>}]} {
    %c0 = arith.constant 0 : index
    %c0_0 = arith.constant 0 : index
    %0 = vector.load %arg1[%c0, %c0_0] : memref<16x32xf32, #tpu.memory_space<vmem>>, vector<16x32xf32>
    %c0_1 = arith.constant 0 : index
    %c0_2 = arith.constant 0 : index
    %1 = vector.load %arg2[%c0_1, %c0_2] : memref<32x64xf32, #tpu.memory_space<vmem>>, vector<32x64xf32>
    %cst = arith.constant dense<0.000000e+00> : vector<16x64xf32>
    %2 = tpu.matmul %0, %1, %cst {dimension_numbers = #tpu.dot_dimension_numbers<[1], [0], [0], [1], [0, 0, 1, 1], [], []>} : vector<16x32xf32>, vector<32x64xf32>, vector<16x64xf32> -> vector<16x64xf32>
    %c0_3 = arith.constant 0 : index
    %c0_4 = arith.constant 0 : index
    %3 = vector.load %arg3[%c0_3, %c0_4] : memref<1x64xf32, #tpu.memory_space<vmem>>, vector<1x64xf32>
    %4 = vector.broadcast %3 : vector<1x64xf32> to vector<16x64xf32>
    %5 = arith.addf %2, %4 : vector<16x64xf32>
    %c0_5 = arith.constant 0 : index
    %c0_6 = arith.constant 0 : index
    %6 = vector.load %arg4[%c0_5, %c0_6] : memref<16x64xf32, #tpu.memory_space<vmem>>, vector<16x64xf32>
    tpu.vector_store %arg4[%c0_5, %c0_6], %5 {strides = array<i32>} : memref<16x64xf32, #tpu.memory_space<vmem>>, vector<16x64xf32>,
    return
  }
  func.func @transform_0(%arg0: i32) -> (i32, i32) {
    %c0_i32 = arith.constant 0 : i32
    %c0_i32_0 = arith.constant 0 : i32
    return %arg0, %c0_i32 : i32, i32
  }
  func.func @transform_1(%arg0: i32) -> (i32, i32) {
    %c0_i32 = arith.constant 0 : i32
    %c0_i32_0 = arith.constant 0 : i32
    %c0_i32_1 = arith.constant 0 : i32
    return %c0_i32, %c0_i32_0 : i32, i32
  }
  func.func @transform_2(%arg0: i32) -> (i32, i32) {
    %c0_i32 = arith.constant 0 : i32
    %c0_i32_0 = arith.constant 0 : i32
    %c0_i32_1 = arith.constant 0 : i32
    return %c0_i32, %c0_i32_0 : i32, i32
  }
  func.func @transform_3(%arg0: i32) -> (i32, i32) {
    %c0_i32 = arith.constant 0 : i32
    %c0_i32_0 = arith.constant 0 : i32
    return %arg0, %c0_i32 : i32, i32
  }
}

</mosaic_0001>

<llo_original>
// kernel: _lambda_.3
$region0: #{_lambda_.3}
  #allocation0 [shape = 'u32[]', space=smem, size = 0x4, offset = 0x4, fixed_abs, tag = 'smem constant byte address 0x4 - core index']
  #allocation1 [shape = 'u32[72,128]{1,0:T(1,128)}', space=vmem, size = 0x9000, scoped, tag = 'internal scratch']
  %s0 = inlined_call_operand.vmem [shape: f32[16,32], index: 0, kind: input, shape index: {}]
  %s1 = inlined_call_operand.vmem [shape: f32[32,64], index: 1, kind: input, shape index: {}]
  %s2 = inlined_call_operand.vmem [shape: f32[1,64], index: 2, kind: input, shape index: {}]
  %s3 = inlined_call_operand.hbm [shape: f32[16,64], index: 3, kind: output, shape index: {}]
  %s4 = sld [smem:[#allocation0]]
  $region22: #{_lambda_.3} parent=0
    _
  %s6 = ssub.s32 1, %s4
  %s7 = scalar_select 0, %s6, %s4
  $region1: #{_lambda_.3} parent=0
    #allocation2 [shape = 'u8[8192]{0}', space=vmem, size = 0x2000, scoped, tag = 'output window, operand 0, single buffered']
    #allocation3 [shape = 's32[1]{0}', space=sflag, size = 0x4, scoped, tag = 'scoped memory for _lambda_.3']
    %8 = vsyncpa [#allocation3], 0
    // Predicated region
    $region2: #{_lambda_.3} parent=1 // pred_check
      _
    $region3: #{_lambda_.3} parent=1 // pred_check_branch
      %10 = sbr.rel (0) target = $region5
    $region4: #{_lambda_.3} parent=1 // pred_region
      _
    $region5: #{_lambda_.3} parent=1 // pred_fallthru
      _
    // Predicated region
    $region6: #{_lambda_.3} parent=1 // pred_check
      _
    $region7: #{_lambda_.3} parent=1 // pred_check_branch
      %12 = sbr.rel (0) target = $region9
    $region8: #{_lambda_.3} parent=1 // pred_region
      _
    $region9: #{_lambda_.3} parent=1 // pred_fallthru
      _
    // Predicated region
    $region10: #{_lambda_.3} parent=1 // pred_check
      _
    $region11: #{_lambda_.3} parent=1 // pred_check_branch
      %14 = sbr.rel (0) target = $region13
    $region12: #{_lambda_.3} parent=1 // pred_region
      _
    $region13: #{_lambda_.3} parent=1 // pred_fallthru
      _
    %v15 = vld [vmem:[%s0] sm:$0xff]
    %v16 = vld [vmem:[%s0 + $0x8] sm:$0xff]
    %v17 = vld [vmem:[%s1] sm:$0xff]
    %v18 = vld [vmem:[%s1 + $0x8] sm:$0xff]
    %v19 = vld [vmem:[%s1 + $0x10] sm:$0xff]
    %v20 = vld [vmem:[%s1 + $0x18] sm:$0xff]
    %v21 = vld [vmem:[%s2] sm:$0x1]
    %v23 = vperm.slane %v21, 0
    %vm25 = vcmask 261120
    %v27 = vsel %vm25, %v15, 0
    %v30 = vsel %vm25, %v16, 0
    %32 = vmatpush.msra.mxu0 0.0
    %33 = vmatpush.msra.mxu0 0.0
    %34 = vmatpush.msra.mxu0 0.0
    %35 = vmatpush.msra.mxu0 0.0
    %36 = vmatpush.msra.mxu0 0.0
    %37 = vmatpush.msra.mxu0 0.0
    %38 = vmatpush.msra.mxu0 0.0
    %39 = vmatpush.msra.mxu0 0.0
    %40 = vmatpush.msra.mxu0 0.0
    %41 = vmatpush.msra.mxu0 0.0
    %42 = vmatpush.msra.mxu0 0.0
    %43 = vmatpush.msra.mxu0 0.0
    %44 = vmatpush.msra.mxu0 %v20
    %45 = vmatpush.msra.mxu0 %v19
    %46 = vmatpush.msra.mxu0 %v18
    %47 = vmatpush.msra.mxu0 %v17
    %48 = vmatmul.f32.gmra.mxu0 %v27
    %v49 = vpop.f32.mrf.mxu0
    %v50 = vadd.f32 %v23, %v49
    %51 = vmatmul.f32.gmra.mxu0 %v30
    %v52 = vpop.f32.mrf.mxu0
    %v53 = vadd.f32 %v23, %v52
    %54 = vdwg.mxu0
    %vm55 = vcmask 523264
    %56 = vst.msk [vmem:[#allocation2] sm:$0xff] %vm55, %v50
    %57 = vst.msk [vmem:[#allocation2 + $0x8] sm:$0xff] %vm55, %v53
    // Predicated region
    $region14: #{_lambda_.3} parent=1 // pred_check
      _
    $region15: #{_lambda_.3} parent=1 // pred_check_branch
      %59 = sbr.rel (0) target = $region17
    $region16: #{_lambda_.3} parent=1 // pred_region
      %61 = vsyncadd [#allocation3], 0
      %s62 = sshll.u32 [#allocation2], 4
      %s63 = int_to_ptr.vmem [resolvable:$true] %s62
      %s64 = sshll.u32 %s3, 4
      %s65 = int_to_ptr.hbm [resolvable:$true] %s64
      %70 = dma.vmem_to_hbm [thread:$0]  %s63, 256, %s65, [#allocation3], 128, 128, 8
    $region17: #{_lambda_.3} parent=1 // pred_fallthru
      _
    // Predicated region
    $region18: #{_lambda_.3} parent=1 // pred_check
      _
    $region19: #{_lambda_.3} parent=1 // pred_check_branch
      %72 = sbr.rel (0) target = $region21
    $region20: #{_lambda_.3} parent=1 // pred_region
      %74 = dma.done [#allocation3], 256
    $region21: #{_lambda_.3} parent=1 // pred_fallthru
      _
    %75 = vsyncpa [#allocation3], 1

// kernel: _lambda_.2
$region0: #{_lambda_.2}
  #allocation0 [shape = 'u32[]', space=smem, size = 0x4, offset = 0x4, fixed_abs, tag = 'smem constant byte address 0x4 - core index']
  #allocation1 [shape = 'u32[72,128]{1,0:T(1,128)}', space=vmem, size = 0x9000, scoped, tag = 'internal scratch']
  %s0 = inlined_call_operand.vmem [shape: f32[2,4,256], index: 0, kind: input, shape index: {}]
  %s1 = inlined_call_operand.vmem [shape: f32[8,4], index: 1, kind: input, shape index: {}]
  %s2 = inlined_call_operand.vmem [shape: f32[8,1], index: 2, kind: input, shape index: {}]
  %s3 = inlined_call_operand.vmem [shape: f32[2,8,256], index: 3, kind: output, shape index: {}]
  %s4 = sld [smem:[#allocation0]]
  $region45: #{_lambda_.2} parent=0
    _
  %s6 = ssub.s32 1, %s4
  %s7 = scalar_select 0, %s6, %s4
  loop: start=0, step=1, limit=4
  $region2: #{_lambda_.2} parent=0 // loop_pre_header
    _
  $region3: #{_lambda_.2} parent=0 // loop_header
    %s9 = sphi 0, %s13
    %p10 = scmp.ge.s32.totalorder %s9, 4
    %s16 = sphi 0, %s28
    %s17 = sphi 0, %s24
    %s18 = sphi 0, %s16
    %s19 = sphi 0, %s17
    %s20 = sphi 0, %s18
    %s21 = sphi 0, %s19
    %s33 = sphi 0, %s35
    %s36 = sphi 0, %s33
    %s37 = sphi 0, %s36
    %s53 = sphi 0, %s37
    %s57 = sphi 0, %s57
    %s59 = sphi 0, %s57
    %s60 = sphi 0, %s59
    %s74 = sphi 0, %s60
    %s78 = sphi 0, %s78
    %s80 = sphi 0, %s78
    %s81 = sphi 0, %s80
    %s95 = sphi 0, %s81
    %s103 = sphi 0, %s105
    %s106 = sphi 0, %s103
    %s107 = sphi 0, %s106
    %s123 = sphi 0, %s107
  $region4: #{_lambda_.2} parent=0 // loop_header_branch
    %12 = sbr.rel (%p10) target = $region8
  $region5: #{_lambda_.2} parent=0 // loop_body
    %s14 = ssub.s32 %s9, 1
    %s15 = ssub.s32 %s9, 2
    %s22 = sadd.s32 1, %s17
    %p23 = scmp.ge.s32.totalorder %s22, 1
    %s24 = scalar_select %p23, 0, %s22
    %s25 = sadd.s32 1, %s16
    %s26 = scalar_select %p23, %s25, %s16
    %p27 = scmp.ge.s32.totalorder %s26, 2
    %s28 = scalar_select %p27, 0, %s26
    %s29 = ssub.s32 %s16, %s28
    %s30 = ssub.s32 %s17, %s24
    %s31 = sor.u32 %s29, %s30
    %p32 = scmp.eq.s32.totalorder %s31, 0
    %s34 = sadd.s32 %s33, 1
    %s35 = scalar_select %p32, %s33, %s34
    %p38 = pneg %p32
    %p39 = scmp.eq.s32.totalorder %s9, 1
    %p40 = por %p38, %p39
    %p41 = scmp.ne.s32.totalorder %s33, %s36
    %p42 = scmp.eq.s32.totalorder %s9, 0
    %p43 = por %p41, %p42
    %p44 = scmp.ne.s32.totalorder %s33, %s36
    %p45 = scmp.eq.s32.totalorder %s14, 1
    %p46 = por %p44, %p45
    %p47 = scmp.ne.s32.totalorder %s36, %s37
    %p48 = scmp.eq.s32.totalorder %s14, 0
    %p49 = por %p47, %p48
    %p50 = scmp.ne.s32.totalorder %s36, %s37
    %p51 = scmp.eq.s32.totalorder %s15, 1
    %p52 = por %p50, %p51
    %p54 = scmp.ne.s32.totalorder %s37, %s53
    %p55 = scmp.eq.s32.totalorder %s15, 0
    %p56 = por %p54, %p55
    %s58 = sadd.s32 %s57, 1
    %p61 = scmp.eq.s32.totalorder %s9, 1
    %p62 = scmp.ne.s32.totalorder %s57, %s59
    %p63 = scmp.eq.s32.totalorder %s9, 0
    %p64 = por %p62, %p63
    %p65 = scmp.ne.s32.totalorder %s57, %s59
    %p66 = scmp.eq.s32.totalorder %s14, 1
    %p67 = por %p65, %p66
    %p68 = scmp.ne.s32.totalorder %s59, %s60
    %p69 = scmp.eq.s32.totalorder %s14, 0
    %p70 = por %p68, %p69
    %p71 = scmp.ne.s32.totalorder %s59, %s60
    %p72 = scmp.eq.s32.totalorder %s15, 1
    %p73 = por %p71, %p72
    %p75 = scmp.ne.s32.totalorder %s60, %s74
    %p76 = scmp.eq.s32.totalorder %s15, 0
    %p77 = por %p75, %p76
    %s79 = sadd.s32 %s78, 1
    %p82 = scmp.eq.s32.totalorder %s9, 1
    %p83 = scmp.ne.s32.totalorder %s78, %s80
    %p84 = scmp.eq.s32.totalorder %s9, 0
    %p85 = por %p83, %p84
    %p86 = scmp.ne.s32.totalorder %s78, %s80
    %p87 = scmp.eq.s32.totalorder %s14, 1
    %p88 = por %p86, %p87
    %p89 = scmp.ne.s32.totalorder %s80, %s81
    %p90 = scmp.eq.s32.totalorder %s14, 0
    %p91 = por %p89, %p90
    %p92 = scmp.ne.s32.totalorder %s80, %s81
    %p93 = scmp.eq.s32.totalorder %s15, 1
    %p94 = por %p92, %p93
    %p96 = scmp.ne.s32.totalorder %s81, %s95
    %p97 = scmp.eq.s32.totalorder %s15, 0
    %p98 = por %p96, %p97
    %s99 = ssub.s32 %s16, %s28
    %s100 = ssub.s32 %s17, %s24
    %s101 = sor.u32 %s99, %s100
    %p102 = scmp.eq.s32.totalorder %s101, 0
    %s104 = sadd.s32 %s103, 1
    %s105 = scalar_select %p102, %s103, %s104
    %p108 = pneg %p102
    %p109 = scmp.eq.s32.totalorder %s9, 1
    %p110 = por %p108, %p109
    %p111 = scmp.ne.s32.totalorder %s103, %s106
    %p112 = scmp.eq.s32.totalorder %s9, 0
    %p113 = por %p111, %p112
    %p114 = scmp.ne.s32.totalorder %s103, %s106
    %p115 = scmp.eq.s32.totalorder %s14, 1
    %p116 = por %p114, %p115
    %p117 = scmp.ne.s32.totalorder %s106, %s107
    %p118 = scmp.eq.s32.totalorder %s14, 0
    %p119 = por %p117, %p118
    %p120 = scmp.ne.s32.totalorder %s106, %s107
    %p121 = scmp.eq.s32.totalorder %s15, 1
    %p122 = por %p120, %p121
    %p124 = scmp.ne.s32.totalorder %s107, %s123
    %p125 = scmp.eq.s32.totalorder %s15, 0
    %p126 = por %p124, %p125
    %p127 = scmp.le.s32.totalorder 1, %s9
    %p128 = scmp.lt.s32.totalorder %s9, 3
    %p129 = pnand %p127, %p128
    %p130 = pneg %p129
    // Predicated region
    $region9: #{_lambda_.2} parent=5 // pred_check
      _
    $region10: #{_lambda_.2} parent=5 // pred_check_branch
      %132 = sbr.rel (%p129) target = $region12
    $region11: #{_lambda_.2} parent=5 // pred_region
      %s133 = ssub.s32 %s9, 1
      // Predicated region
      $region13: #{_lambda_.2} parent=11 // pred_check
        %p134 = pneg %p70
      $region14: #{_lambda_.2} parent=11 // pred_check_branch
        %136 = sbr.rel (%p134) target = $region16
      $region15: #{_lambda_.2} parent=11 // pred_region
        _
      $region16: #{_lambda_.2} parent=11 // pred_fallthru
        _
      // Predicated region
      $region17: #{_lambda_.2} parent=11 // pred_check
        %p137 = pneg %p91
      $region18: #{_lambda_.2} parent=11 // pred_check_branch
        %139 = sbr.rel (%p137) target = $region20
      $region19: #{_lambda_.2} parent=11 // pred_region
        _
      $region20: #{_lambda_.2} parent=11 // pred_fallthru
        _
    $region12: #{_lambda_.2} parent=5 // pred_fallthru
      _
    %p140 = scmp.lt.s32.totalorder %s9, 2
    // Predicated region
    $region21: #{_lambda_.2} parent=5 // pred_check
      %p141 = pneg %p140
    $region22: #{_lambda_.2} parent=5 // pred_check_branch
      %143 = sbr.rel (%p141) target = $region24
    $region23: #{_lambda_.2} parent=5 // pred_region
      // Predicated region
      $region25: #{_lambda_.2} parent=23 // pred_check
        %p144 = pneg %p43
      $region26: #{_lambda_.2} parent=23 // pred_check_branch
        %146 = sbr.rel (%p144) target = $region28
      $region27: #{_lambda_.2} parent=23 // pred_region
        %s147 = smul.u32 2, %s17
        %p148 = scmp.lt.s32.totalorder %s16, 1
        %s149 = scalar_select %p148, %s16, 1
        %p150 = scmp.lt.s32.totalorder %s147, 1
        %s151 = scalar_select %p150, %s147, 1
        %s152 = smul.addr %s149, 2
        %s153 = sadd.s32 %s151, %s152
        %s154 = smul.addr %s153, 4
        %s155 = scalar_lea.vmem %s0, %s154
        %s156 = smul.u32 2, %s17
      $region28: #{_lambda_.2} parent=23 // pred_fallthru
        _
    $region24: #{_lambda_.2} parent=5 // pred_fallthru
      _
    %p157 = scmp.le.s32.totalorder 1, %s9
    %p158 = scmp.lt.s32.totalorder %s9, 3
    %p159 = pnand %p157, %p158
    %p160 = pneg %p159
    // Predicated region
    $region29: #{_lambda_.2} parent=5 // pred_check
      _
    $region30: #{_lambda_.2} parent=5 // pred_check_branch
      %162 = sbr.rel (%p159) target = $region32
    $region31: #{_lambda_.2} parent=5 // pred_region
      %s163 = ssub.s32 %s9, 1
      %s164 = smul.u32 2, %s19
      %p165 = scmp.lt.s32.totalorder %s18, 1
      %s166 = scalar_select %p165, %s18, 1
      %p167 = scmp.lt.s32.totalorder %s164, 1
      %s168 = scalar_select %p167, %s164, 1
      %s169 = smul.addr %s166, 2
      %s170 = sadd.s32 %s168, %s169
      %s171 = smul.addr %s170, 4
      %s172 = scalar_lea.vmem %s0, %s171
      %p173 = pneg %p49
      %p174 = pneg %p46
      %p175 = pneg %p70
      %p176 = pneg %p67
      %p177 = pneg %p91
      %p178 = pneg %p88
      %p179 = pneg %p119
      %p180 = pneg %p116
      %s181 = smul.u32 2, %s19
      %p182 = scmp.lt.s32.totalorder %s18, 1
      %s183 = scalar_select %p182, %s18, 1
      %p184 = scmp.lt.s32.totalorder %s181, 1
      %s185 = scalar_select %p184, %s181, 1
      %s186 = smul.addr %s183, 2
      %s187 = sadd.s32 %s185, %s186
      %s188 = smul.addr %s187, 8
      %s189 = scalar_lea.vmem %s3, %s188
      %s190 = smul.u32 2, %s19
      %p191 = scmp.lt.s32.totalorder %s18, 1
      %s192 = scalar_select %p191, %s18, 1
      %p193 = scmp.lt.s32.totalorder %s190, 1
      %s194 = scalar_select %p193, %s190, 1
      %s195 = smul.addr %s192, 2
      %s196 = sadd.s32 %s194, %s195
      %s197 = smul.addr %s196, 4
      %s198 = scalar_lea.vmem %s0, %s197
      %s199 = smul.u32 2, %s19
      %s200 = smul.u32 2, %s19
      %p201 = scmp.lt.s32.totalorder %s18, 1
      %s202 = scalar_select %p201, %s18, 1
      %p203 = scmp.lt.s32.totalorder %s200, 1
      %s204 = scalar_select %p203, %s200, 1
      %s205 = smul.addr %s202, 2
      %s206 = sadd.s32 %s204, %s205
      %s207 = smul.addr %s206, 8
      %s208 = scalar_lea.vmem %s3, %s207
      %s209 = smul.u32 2, %s19
      %v210 = vld [vmem:[%s1] sm:$0xff]
      %v211 = vld [vmem:[%s198] sm:$0xff]
      %v212 = vld [vmem:[%s2] sm:$0xff]
      %214 = vset.pattern.permute.xlu0 0
      %215 = vperm.xlu0 %214, %v212
      %v216 = vpop.permute.xlu0 %215
      %219 = vst [vmem:[#allocation1] ss:$2 sm:$0xff] %v211
      %v220 = vld.sshfl [vmem:[#allocation1] sm:$0xff pattern:$0x75316420]
      %v221 = vld.sshfl [vmem:[#allocation1 + $0x8] sm:$0xff pattern:$0x75316420]
      %vm222 = vcmask 31744
      %v224 = vsel %vm222, %v210, 0
      %vm226 = vcmask 1043456
      %v227 = vsel %vm226, %v220, 0
      %v229 = vsel %vm226, %v221, 0
      %231 = vmatpush.msra.mxu0 0.0
      %232 = vmatpush.msra.mxu0 0.0
      %233 = vmatpush.msra.mxu0 0.0
      %234 = vmatpush.msra.mxu0 0.0
      %235 = vmatpush.msra.mxu0 0.0
      %236 = vmatpush.msra.mxu0 0.0
      %237 = vmatpush.msra.mxu0 0.0
      %238 = vmatpush.msra.mxu0 0.0
      %239 = vmatpush.msra.mxu0 0.0
      %240 = vmatpush.msra.mxu0 0.0
      %241 = vmatpush.msra.mxu0 0.0
      %242 = vmatpush.msra.mxu0 0.0
      %243 = vmatpush.msra.mxu0 0.0
      %244 = vmatpush.msra.mxu0 0.0
      %245 = vmatpush.msra.mxu0 0.0
      %246 = vmatpush.msra.mxu0 %v227
      %247 = vmatmul.f32.gmra.mxu0 %v224
      %v248 = vpop.f32.mrf.mxu0
      %v249 = vadd.f32 %v216, %v248
      %250 = vdwg.mxu0
      %251 = vmatpush.msra.mxu0 0.0
      %252 = vmatpush.msra.mxu0 0.0
      %253 = vmatpush.msra.mxu0 0.0
      %254 = vmatpush.msra.mxu0 0.0
      %255 = vmatpush.msra.mxu0 0.0
      %256 = vmatpush.msra.mxu0 0.0
      %257 = vmatpush.msra.mxu0 0.0
      %258 = vmatpush.msra.mxu0 0.0
      %259 = vmatpush.msra.mxu0 0.0
      %260 = vmatpush.msra.mxu0 0.0
      %261 = vmatpush.msra.mxu0 0.0
      %262 = vmatpush.msra.mxu0 0.0
      %263 = vmatpush.msra.mxu0 0.0
      %264 = vmatpush.msra.mxu0 0.0
      %265 = vmatpush.msra.mxu0 0.0
      %266 = vmatpush.msra.mxu0 %v229
      %267 = vmatmul.f32.gmra.mxu0 %v224
      %v268 = vpop.f32.mrf.mxu0
      %v269 = vadd.f32 %v216, %v268
      %270 = vdwg.mxu0
      %271 = vst [vmem:[%s208] sm:$0xff] %v249
      %272 = vst [vmem:[%s208 + $0x8] sm:$0xff] %v269
      %s273 = smul.u32 2, %s19
      %p274 = scmp.lt.s32.totalorder %s18, 1
      %s275 = scalar_select %p274, %s18, 1
      %p276 = scmp.lt.s32.totalorder %s273, 1
      %s277 = scalar_select %p276, %s273, 1
      %s278 = smul.addr %s275, 2
      %s279 = sadd.s32 %s277, %s278
      %s280 = smul.addr %s279, 8
      %s281 = scalar_lea.vmem %s3, %s280
      // Predicated region
      $region33: #{_lambda_.2} parent=31 // pred_check
        %p282 = pneg %p116
      $region34: #{_lambda_.2} parent=31 // pred_check_branch
        %284 = sbr.rel (%p282) target = $region36
      $region35: #{_lambda_.2} parent=31 // pred_region
        %s285 = smul.u32 2, %s19
      $region36: #{_lambda_.2} parent=31 // pred_fallthru
        _
    $region32: #{_lambda_.2} parent=5 // pred_fallthru
      _
    %p286 = scmp.le.s32.totalorder 2, %s9
    // Predicated region
    $region37: #{_lambda_.2} parent=5 // pred_check
      %p287 = pneg %p286
    $region38: #{_lambda_.2} parent=5 // pred_check_branch
      %289 = sbr.rel (%p287) target = $region40
    $region39: #{_lambda_.2} parent=5 // pred_region
      %s290 = ssub.s32 %s9, 2
      // Predicated region
      $region41: #{_lambda_.2} parent=39 // pred_check
        %p291 = pneg %p122
      $region42: #{_lambda_.2} parent=39 // pred_check_branch
        %293 = sbr.rel (%p291) target = $region44
      $region43: #{_lambda_.2} parent=39 // pred_region
        %s294 = smul.u32 2, %s21
        %p295 = scmp.lt.s32.totalorder %s20, 1
        %s296 = scalar_select %p295, %s20, 1
        %p297 = scmp.lt.s32.totalorder %s294, 1
        %s298 = scalar_select %p297, %s294, 1
        %s299 = smul.addr %s296, 2
        %s300 = sadd.s32 %s298, %s299
        %s301 = smul.addr %s300, 8
        %s302 = scalar_lea.vmem %s3, %s301
      $region44: #{_lambda_.2} parent=39 // pred_fallthru
        _
    $region40: #{_lambda_.2} parent=5 // pred_fallthru
      _
  $region6: #{_lambda_.2} parent=0 // loop_footer
    %s13 = sadd.s32 1, %s9
  $region7: #{_lambda_.2} parent=0 // loop_footer_branch
    %8 = sbr.rel target = $region3
  $region8: #{_lambda_.2} parent=0 // loop_exit
    _

</llo_original>
